<compile_context>
chip_gen: v7x
topology: tpu7x:2x2x1
jax: 0.10.0
libtpu: 0.0.40
codegen_flags: <defaults>
</compile_context>

<pallas_src>
import functools

import jax
import jax.numpy as jnp
from jax.experimental import pallas as pl
from jax.experimental.pallas import tpu as pltpu


def _round_up(x: int, m: int) -> int:
    return ((x + m - 1) // m) * m


def _domain_classifier_kernel(x_ref, w2_ref, b2_ref, w3_ref, b3_ref,
                              out_ref, fc2_ref):
    # fc2 = relu(x @ W2 + b2)   -- bf16 operands, f32 accumulation on the MXU.
    fc2 = jnp.dot(x_ref[...], w2_ref[...],
                  preferred_element_type=jnp.float32)
    fc2 = fc2 + b2_ref[...]                      # (TB, D) + (1, D) broadcast (VPU)
    fc2 = jnp.maximum(fc2, 0.0)                  # ReLU (VPU)
    fc2_ref[...] = fc2                           # f32 output (module returns it)

    # out = tanh(fc2 @ W3 + b3) -- feed fc2 back through the MXU in bf16.
    out = jnp.dot(fc2.astype(jnp.bfloat16), w3_ref[...],
                  preferred_element_type=jnp.float32)
    out = out + b3_ref[...]                      # (TB, O) + (1, O) broadcast
    out_ref[...] = jnp.tanh(out)                 # tanh on the EUP, f32 store


@functools.partial(jax.jit, static_argnames=("conf",))
def domain_classifier_forward(hidden, w2, b2, w3, b3, conf):
    """hidden: (B, D).  w2: (D, D), b2: (D,), w3: (D, O), b3: (O,)."""
    nb_flow, map_h, map_w = conf[1], conf[2], conf[3]
    B, D = hidden.shape
    O = w3.shape[1]
    assert O == nb_flow * map_h * map_w

    # --- batch tiling / padding -------------------------------------------
    # 16-row alignment keeps the bf16 activation tiles fully sublane-packed;
    # 256-row tiles amortize the ~0.35us per-grid-step overhead at large B.
    if B >= 256:
        tile_b = 256
    elif B >= 128:
        tile_b = 128
    else:
        tile_b = _round_up(B, 16)
    b_pad = _round_up(B, tile_b)
    # Lane-dense output dim (multiple of 128); sliced off after the call.
    o_pad = _round_up(O, 128)

    x = hidden.astype(jnp.bfloat16)
    if b_pad != B:
        x = jnp.pad(x, ((0, b_pad - B), (0, 0)))

    w2_bf = w2.astype(jnp.bfloat16)
    w3_bf = w3.astype(jnp.bfloat16)
    if o_pad != O:
        w3_bf = jnp.pad(w3_bf, ((0, 0), (0, o_pad - O)))
        b3 = jnp.pad(b3, (0, o_pad - O))

    b2_2d = b2.reshape(1, D).astype(jnp.float32)
    b3_2d = b3.reshape(1, o_pad).astype(jnp.float32)

    # --- VMEM budget (resident weights + double-buffered activation tiles) --
    vmem_est = (
        D * D * 2 + D * o_pad * 2            # bf16 weights, resident
        + (D + o_pad) * 4                    # f32 biases
        + 2 * tile_b * D * 2                 # x tiles (bf16, 2 buffers)
        + 2 * tile_b * D * 4                 # fc2 tiles (f32, 2 buffers)
        + 2 * tile_b * o_pad * 4             # out tiles (f32, 2 buffers)
        + tile_b * (D + o_pad) * 4           # in-kernel temporaries
    )
    vmem_limit = min(max(2 * vmem_est, 32 * 1024 * 1024), 64 * 1024 * 1024)
    # TODO(synk): if D*D bf16 weights ever exceed ~48 MiB (v7x VMEM), add a
    # K-tiling grid axis + f32 accumulator scratch instead of raising the limit.

    grid = (b_pad // tile_b,)

    out_flat, fc2_out = pl.pallas_call(
        _domain_classifier_kernel,
        out_shape=(
            jax.ShapeDtypeStruct((b_pad, o_pad), jnp.float32),
            jax.ShapeDtypeStruct((b_pad, D), jnp.float32),
        ),
        grid=grid,
        in_specs=[
            pl.BlockSpec((tile_b, D), lambda i: (i, 0)),    # x tile (streamed)
            pl.BlockSpec((D, D), lambda i: (0, 0)),         # W2 (resident)
            pl.BlockSpec((1, D), lambda i: (0, 0)),         # b2 (resident)
            pl.BlockSpec((D, o_pad), lambda i: (0, 0)),     # W3 (resident)
            pl.BlockSpec((1, o_pad), lambda i: (0, 0)),     # b3 (resident)
        ],
        out_specs=(
            pl.BlockSpec((tile_b, o_pad), lambda i: (i, 0)),
            pl.BlockSpec((tile_b, D), lambda i: (i, 0)),
        ),
        compiler_params=pltpu.CompilerParams(
            dimension_semantics=("parallel",),   # split tiles across v7x's 2 TCs
            vmem_limit_bytes=int(vmem_limit),
        ),
    )(x, w2_bf, b2_2d, w3_bf, b3_2d)

    # Strip padding; matches PyTorch: out.view(-1, nb_flow, map_h, map_w).
    out = out_flat[:B, :O].reshape(-1, nb_flow, map_h, map_w)
    fc2_out = fc2_out[:B, :]
    return out, fc2_out


if __name__ == "__main__":
    # Module defaults: input_size=256, conf=(8, 2, 20, 20)  -> O = 800.
    input_size = 256                      # D
    conf = (8, 2, 20, 20)                 # (unused, nb_flow, map_h, map_w)
    nb_flow, map_h, map_w = conf[1], conf[2], conf[3]
    out_size = nb_flow * map_h * map_w    # 800
    batch = 2

    key = jax.random.PRNGKey(0)
    k_x, k_w2, k_b2, k_w3, k_b3 = jax.random.split(key, 5)

    hidden = jax.random.normal(k_x, (batch, input_size), dtype=jnp.float32)
    # Deterministic synthetic parameters (shapes from nn.Linear in __init__),
    # stored as (D_in, D_out) = transpose of PyTorch's (out, in).
    w2 = jax.random.normal(k_w2, (input_size, input_size), dtype=jnp.float32) * 0.1
    b2 = jax.random.normal(k_b2, (input_size,), dtype=jnp.float32) * 0.1
    w3 = jax.random.normal(k_w3, (input_size, out_size), dtype=jnp.float32) * 0.1
    b3 = jax.random.normal(k_b3, (out_size,), dtype=jnp.float32) * 0.1

    out, fc2_out = domain_classifier_forward(hidden, w2, b2, w3, b3, conf)
    jax.block_until_ready((out, fc2_out))

    # Reference check in plain JAX (f32 math; kernel uses bf16 operands with
    # f32 accumulation, so tolerances are loosened accordingly).
    fc2_ref = jnp.maximum(hidden @ w2 + b2, 0.0)
    out_ref = jnp.tanh(fc2_ref @ w3 + b3).reshape(-1, nb_flow, map_h, map_w)
    assert out.shape == (batch, nb_flow, map_h, map_w)
    assert fc2_out.shape == (batch, input_size)
    assert jnp.allclose(out, out_ref, rtol=2e-2, atol=5e-2), (
        float(jnp.max(jnp.abs(out - out_ref))))
    assert jnp.allclose(fc2_out, fc2_ref, rtol=2e-2, atol=5e-2), (
        float(jnp.max(jnp.abs(fc2_out - fc2_ref))))

    print("KERNEL_OK")
</pallas_src>

<mosaic_0001>
module attributes {stable_mosaic.version = 11 : i64} {
  func.func @_domain_classifier_kernel(%arg0: i32, %arg1: memref<16x256xbf16, #tpu.memory_space<vmem>>, %arg2: memref<256x256xbf16, #tpu.memory_space<vmem>>, %arg3: memref<1x256xf32, #tpu.memory_space<vmem>>, %arg4: memref<256x896xbf16, #tpu.memory_space<vmem>>, %arg5: memref<1x896xf32, #tpu.memory_space<vmem>>, %arg6: memref<16x896xf32, #tpu.memory_space<vmem>>, %arg7: memref<16x256xf32, #tpu.memory_space<vmem>>) attributes {dimension_semantics = [#tpu.dimension_semantics<parallel>], iteration_bounds = array<i64: 1>, scalar_prefetch = 0 : i64, scratch_operands = 0 : i64, tpu.core_type = #tpu.core_type<tc>, window_params = [{transform_indices = @transform_0, window_bounds = array<i64: 16, 256>}, {pipeline_mode = #tpu.pipeline_mode<synchronous>, transform_indices = @transform_1, window_bounds = array<i64: 256, 256>}, {pipeline_mode = #tpu.pipeline_mode<synchronous>, transform_indices = @transform_2, window_bounds = array<i64: 1, 256>}, {pipeline_mode = #tpu.pipeline_mode<synchronous>, transform_indices = @transform_3, window_bounds = array<i64: 256, 896>}, {pipeline_mode = #tpu.pipeline_mode<synchronous>, transform_indices = @transform_4, window_bounds = array<i64: 1, 896>}, {transform_indices = @transform_5, window_bounds = array<i64: 16, 896>}, {transform_indices = @transform_6, window_bounds = array<i64: 16, 256>}]} {
    %c0 = arith.constant 0 : index
    %c0_0 = arith.constant 0 : index
    %0 = vector.load %arg1[%c0, %c0_0] : memref<16x256xbf16, #tpu.memory_space<vmem>>, vector<16x256xbf16>
    %c0_1 = arith.constant 0 : index
    %c0_2 = arith.constant 0 : index
    %1 = vector.load %arg2[%c0_1, %c0_2] : memref<256x256xbf16, #tpu.memory_space<vmem>>, vector<256x256xbf16>
    %cst = arith.constant dense<0.000000e+00> : vector<16x256xf32>
    %2 = tpu.matmul %0, %1, %cst {dimension_numbers = #tpu.dot_dimension_numbers<[1], [0], [0], [1], [0, 0, 1, 1], [], []>} : vector<16x256xbf16>, vector<256x256xbf16>, vector<16x256xf32> -> vector<16x256xf32>
    %c0_3 = arith.constant 0 : index
    %c0_4 = arith.constant 0 : index
    %3 = vector.load %arg3[%c0_3, %c0_4] : memref<1x256xf32, #tpu.memory_space<vmem>>, vector<1x256xf32>
    %4 = vector.broadcast %3 : vector<1x256xf32> to vector<16x256xf32>
    %5 = arith.addf %2, %4 : vector<16x256xf32>
    %cst_5 = arith.constant 0.000000e+00 : f32
    %6 = vector.broadcast %cst_5 : f32 to vector<16x256xf32>
    %7 = arith.maximumf %5, %6 : vector<16x256xf32>
    %c0_6 = arith.constant 0 : index
    %c0_7 = arith.constant 0 : index
    %8 = vector.load %arg7[%c0_6, %c0_7] : memref<16x256xf32, #tpu.memory_space<vmem>>, vector<16x256xf32>
    tpu.vector_store %arg7[%c0_6, %c0_7], %7 {strides = array<i32>} : memref<16x256xf32, #tpu.memory_space<vmem>>, vector<16x256xf32>,
    %9 = arith.truncf %7 : vector<16x256xf32> to vector<16x256xbf16>
    %c0_8 = arith.constant 0 : index
    %c0_9 = arith.constant 0 : index
    %10 = vector.load %arg4[%c0_8, %c0_9] : memref<256x896xbf16, #tpu.memory_space<vmem>>, vector<256x896xbf16>
    %cst_10 = arith.constant dense<0.000000e+00> : vector<16x896xf32>
    %11 = tpu.matmul %9, %10, %cst_10 {dimension_numbers = #tpu.dot_dimension_numbers<[1], [0], [0], [1], [0, 0, 1, 1], [], []>} : vector<16x256xbf16>, vector<256x896xbf16>, vector<16x896xf32> -> vector<16x896xf32>
    %c0_11 = arith.constant 0 : index
    %c0_12 = arith.constant 0 : index
    %12 = vector.load %arg5[%c0_11, %c0_12] : memref<1x896xf32, #tpu.memory_space<vmem>>, vector<1x896xf32>
    %13 = vector.broadcast %12 : vector<1x896xf32> to vector<16x896xf32>
    %14 = arith.addf %11, %13 : vector<16x896xf32>
    %15 = math.tanh %14 : vector<16x896xf32>
    %c0_13 = arith.constant 0 : index
    %c0_14 = arith.constant 0 : index
    %16 = vector.load %arg6[%c0_13, %c0_14] : memref<16x896xf32, #tpu.memory_space<vmem>>, vector<16x896xf32>
    tpu.vector_store %arg6[%c0_13, %c0_14], %15 {strides = array<i32>} : memref<16x896xf32, #tpu.memory_space<vmem>>, vector<16x896xf32>,
    return
  }
  func.func @transform_0(%arg0: i32) -> (i32, i32) {
    %c0_i32 = arith.constant 0 : i32
    %c0_i32_0 = arith.constant 0 : i32
    return %arg0, %c0_i32 : i32, i32
  }
  func.func @transform_1(%arg0: i32) -> (i32, i32) {
    %c0_i32 = arith.constant 0 : i32
    %c0_i32_0 = arith.constant 0 : i32
    %c0_i32_1 = arith.constant 0 : i32
    return %c0_i32, %c0_i32_0 : i32, i32
  }
  func.func @transform_2(%arg0: i32) -> (i32, i32) {
    %c0_i32 = arith.constant 0 : i32
    %c0_i32_0 = arith.constant 0 : i32
    %c0_i32_1 = arith.constant 0 : i32
    return %c0_i32, %c0_i32_0 : i32, i32
  }
  func.func @transform_3(%arg0: i32) -> (i32, i32) {
    %c0_i32 = arith.constant 0 : i32
    %c0_i32_0 = arith.constant 0 : i32
    %c0_i32_1 = arith.constant 0 : i32
    return %c0_i32, %c0_i32_0 : i32, i32
  }
  func.func @transform_4(%arg0: i32) -> (i32, i32) {
    %c0_i32 = arith.constant 0 : i32
    %c0_i32_0 = arith.constant 0 : i32
    %c0_i32_1 = arith.constant 0 : i32
    return %c0_i32, %c0_i32_0 : i32, i32
  }
  func.func @transform_5(%arg0: i32) -> (i32, i32) {
    %c0_i32 = arith.constant 0 : i32
    %c0_i32_0 = arith.constant 0 : i32
    return %arg0, %c0_i32 : i32, i32
  }
  func.func @transform_6(%arg0: i32) -> (i32, i32) {
    %c0_i32 = arith.constant 0 : i32
    %c0_i32_0 = arith.constant 0 : i32
    return %arg0, %c0_i32 : i32, i32
  }
}

</mosaic_0001>

<llo_original>
// kernel: domain_classifier_forward.1
$region0: #{domain_classifier_forward.1}
  #allocation0 [shape = 'u32[]', space=smem, size = 0x4, offset = 0x4, fixed_abs, tag = 'smem constant byte address 0x4 - core index']
  #allocation1 [shape = 'u32[144,128]{1,0:T(1,128)}', space=vmem, size = 0x12000, scoped, tag = 'internal scratch']
  %s0 = inlined_call_operand.vmem [shape: bf16[16,256], index: 0, kind: input, shape index: {}]
  %s1 = inlined_call_operand.vmem [shape: bf16[256,256], index: 1, kind: input, shape index: {}]
  %s2 = inlined_call_operand.vmem [shape: f32[1,256], index: 2, kind: input, shape index: {}]
  %s3 = inlined_call_operand.vmem [shape: bf16[256,896], index: 3, kind: input, shape index: {}]
  %s4 = inlined_call_operand.vmem [shape: f32[1,896], index: 4, kind: input, shape index: {}]
  %s5 = inlined_call_operand.vmem [shape: f32[16,896], index: 5, kind: output, shape index: {0}]
  %s6 = inlined_call_operand.vmem [shape: f32[16,256], index: 6, kind: output, shape index: {1}]
  %7 = xla_tuple %s5, %s6
  %s8 = sld [smem:[#allocation0]]
  $region38: #{domain_classifier_forward.1} parent=0
    _
  %s10 = ssub.s32 1, %s8
  %s11 = scalar_select 0, %s10, %s8
  // Predicated region
  $region2: #{domain_classifier_forward.1} parent=0 // pred_check
    _
  $region3: #{domain_classifier_forward.1} parent=0 // pred_check_branch
    %13 = sbr.rel (0) target = $region5
  $region4: #{domain_classifier_forward.1} parent=0 // pred_region
    _
  $region5: #{domain_classifier_forward.1} parent=0 // pred_fallthru
    _
  // Predicated region
  $region6: #{domain_classifier_forward.1} parent=0 // pred_check
    _
  $region7: #{domain_classifier_forward.1} parent=0 // pred_check_branch
    %15 = sbr.rel (0) target = $region9
  $region8: #{domain_classifier_forward.1} parent=0 // pred_region
    _
  $region9: #{domain_classifier_forward.1} parent=0 // pred_fallthru
    _
  // Predicated region
  $region10: #{domain_classifier_forward.1} parent=0 // pred_check
    _
  $region11: #{domain_classifier_forward.1} parent=0 // pred_check_branch
    %17 = sbr.rel (0) target = $region13
  $region12: #{domain_classifier_forward.1} parent=0 // pred_region
    _
  $region13: #{domain_classifier_forward.1} parent=0 // pred_fallthru
    _
  // Predicated region
  $region14: #{domain_classifier_forward.1} parent=0 // pred_check
    _
  $region15: #{domain_classifier_forward.1} parent=0 // pred_check_branch
    %19 = sbr.rel (0) target = $region17
  $region16: #{domain_classifier_forward.1} parent=0 // pred_region
    _
  $region17: #{domain_classifier_forward.1} parent=0 // pred_fallthru
    _
  // Predicated region
  $region18: #{domain_classifier_forward.1} parent=0 // pred_check
    _
  $region19: #{domain_classifier_forward.1} parent=0 // pred_check_branch
    %21 = sbr.rel (0) target = $region21
  $region20: #{domain_classifier_forward.1} parent=0 // pred_region
    _
  $region21: #{domain_classifier_forward.1} parent=0 // pred_fallthru
    _
  %v23 = vld [vmem:[%s0] sm:$0xff]
  %v24 = vld [vmem:[%s0 + $0x8] sm:$0xff]
  %v25 = vld [vmem:[%s1] sm:$0xff]
  %v26 = vld [vmem:[%s1 + $0x8] sm:$0xff]
  %v27 = vld [vmem:[%s1 + $0x10] sm:$0xff]
  %v28 = vld [vmem:[%s1 + $0x18] sm:$0xff]
  %v29 = vld [vmem:[%s1 + $0x20] sm:$0xff]
  %v30 = vld [vmem:[%s1 + $0x28] sm:$0xff]
  %v31 = vld [vmem:[%s1 + $0x30] sm:$0xff]
  %v32 = vld [vmem:[%s1 + $0x38] sm:$0xff]
  %v33 = vld [vmem:[%s1 + $0x40] sm:$0xff]
  %v34 = vld [vmem:[%s1 + $0x48] sm:$0xff]
  %v35 = vld [vmem:[%s1 + $0x50] sm:$0xff]
  %v36 = vld [vmem:[%s1 + $0x58] sm:$0xff]
  %v37 = vld [vmem:[%s1 + $0x60] sm:$0xff]
  %v38 = vld [vmem:[%s1 + $0x68] sm:$0xff]
  %v39 = vld [vmem:[%s1 + $0x70] sm:$0xff]
  %v40 = vld [vmem:[%s1 + $0x78] sm:$0xff]
  %v41 = vld [vmem:[%s1 + $0x80] sm:$0xff]
  %v42 = vld [vmem:[%s1 + $0x88] sm:$0xff]
  %v43 = vld [vmem:[%s1 + $0x90] sm:$0xff]
  %v44 = vld [vmem:[%s1 + $0x98] sm:$0xff]
  %v45 = vld [vmem:[%s1 + $0xa0] sm:$0xff]
  %v46 = vld [vmem:[%s1 + $0xa8] sm:$0xff]
  %v47 = vld [vmem:[%s1 + $0xb0] sm:$0xff]
  %v48 = vld [vmem:[%s1 + $0xb8] sm:$0xff]
  %v49 = vld [vmem:[%s1 + $0xc0] sm:$0xff]
  %v50 = vld [vmem:[%s1 + $0xc8] sm:$0xff]
  %v51 = vld [vmem:[%s1 + $0xd0] sm:$0xff]
  %v52 = vld [vmem:[%s1 + $0xd8] sm:$0xff]
  %v53 = vld [vmem:[%s1 + $0xe0] sm:$0xff]
  %v54 = vld [vmem:[%s1 + $0xe8] sm:$0xff]
  %v55 = vld [vmem:[%s1 + $0xf0] sm:$0xff]
  %v56 = vld [vmem:[%s1 + $0xf8] sm:$0xff]
  %v57 = vld [vmem:[%s2] sm:$0x3]
  %v59 = vlaneseq
  %v60 = vshrl.u32 %v59, 7
  %v61 = vsub.s32 0, %v60
  %v62 = vrot.slane %v57, %v61
  %v63 = vlaneseq
  %v64 = vshrl.u32 %v63, 7
  %v65 = vsub.s32 1, %v64
  %v66 = vrot.slane %v57, %v65
  %v71 = vunpack.c.l.b16 %v23
  %v72 = vunpack.c.h.b16 %v23
  %v73 = vunpack.c.l.b16 %v24
  %v74 = vunpack.c.h.b16 %v24
  %v75 = vpack.c.b16 %v73, %v71
  %v76 = vpack.c.b16 %v74, %v72
  %v111 = vunpack.c.l.b16 %v25
  %v112 = vunpack.c.h.b16 %v25
  %v113 = vunpack.c.l.b16 %v26
  %v114 = vunpack.c.h.b16 %v26
  %v115 = vunpack.c.l.b16 %v27
  %v116 = vunpack.c.h.b16 %v27
  %v117 = vunpack.c.l.b16 %v28
  %v118 = vunpack.c.h.b16 %v28
  %v119 = vunpack.c.l.b16 %v29
  %v120 = vunpack.c.h.b16 %v29
  %v121 = vunpack.c.l.b16 %v30
  %v122 = vunpack.c.h.b16 %v30
  %v123 = vunpack.c.l.b16 %v31
  %v124 = vunpack.c.h.b16 %v31
  %v125 = vunpack.c.l.b16 %v32
  %v126 = vunpack.c.h.b16 %v32
  %v127 = vunpack.c.l.b16 %v33
  %v128 = vunpack.c.h.b16 %v33
  %v129 = vunpack.c.l.b16 %v34
  %v130 = vunpack.c.h.b16 %v34
  %v131 = vunpack.c.l.b16 %v35
  %v132 = vunpack.c.h.b16 %v35
  %v133 = vunpack.c.l.b16 %v36
  %v134 = vunpack.c.h.b16 %v36
  %v135 = vunpack.c.l.b16 %v37
  %v136 = vunpack.c.h.b16 %v37
  %v137 = vunpack.c.l.b16 %v38
  %v138 = vunpack.c.h.b16 %v38
  %v139 = vunpack.c.l.b16 %v39
  %v140 = vunpack.c.h.b16 %v39
  %v141 = vunpack.c.l.b16 %v40
  %v142 = vunpack.c.h.b16 %v40
  %v143 = vunpack.c.l.b16 %v41
  %v144 = vunpack.c.h.b16 %v41
  %v145 = vunpack.c.l.b16 %v42
  %v146 = vunpack.c.h.b16 %v42
  %v147 = vunpack.c.l.b16 %v43
  %v148 = vunpack.c.h.b16 %v43
  %v149 = vunpack.c.l.b16 %v44
  %v150 = vunpack.c.h.b16 %v44
  %v151 = vunpack.c.l.b16 %v45
  %v152 = vunpack.c.h.b16 %v45
  %v153 = vunpack.c.l.b16 %v46
  %v154 = vunpack.c.h.b16 %v46
  %v155 = vunpack.c.l.b16 %v47
  %v156 = vunpack.c.h.b16 %v47
  %v157 = vunpack.c.l.b16 %v48
  %v158 = vunpack.c.h.b16 %v48
  %v159 = vunpack.c.l.b16 %v49
  %v160 = vunpack.c.h.b16 %v49
  %v161 = vunpack.c.l.b16 %v50
  %v162 = vunpack.c.h.b16 %v50
  %v163 = vunpack.c.l.b16 %v51
  %v164 = vunpack.c.h.b16 %v51
  %v165 = vunpack.c.l.b16 %v52
  %v166 = vunpack.c.h.b16 %v52
  %v167 = vunpack.c.l.b16 %v53
  %v168 = vunpack.c.h.b16 %v53
  %v169 = vunpack.c.l.b16 %v54
  %v170 = vunpack.c.h.b16 %v54
  %v171 = vunpack.c.l.b16 %v55
  %v172 = vunpack.c.h.b16 %v55
  %v173 = vunpack.c.l.b16 %v56
  %v174 = vunpack.c.h.b16 %v56
  %v175 = vpack.c.b16 %v113, %v111
  %v176 = vpack.c.b16 %v114, %v112
  %v177 = vpack.c.b16 %v117, %v115
  %v178 = vpack.c.b16 %v118, %v116
  %v179 = vpack.c.b16 %v121, %v119
  %v180 = vpack.c.b16 %v122, %v120
  %v181 = vpack.c.b16 %v125, %v123
  %v182 = vpack.c.b16 %v126, %v124
  %v183 = vpack.c.b16 %v129, %v127
  %v184 = vpack.c.b16 %v130, %v128
  %v185 = vpack.c.b16 %v133, %v131
  %v186 = vpack.c.b16 %v134, %v132
  %v187 = vpack.c.b16 %v137, %v135
  %v188 = vpack.c.b16 %v138, %v136
  %v189 = vpack.c.b16 %v141, %v139
  %v190 = vpack.c.b16 %v142, %v140
  %v191 = vpack.c.b16 %v145, %v143
  %v192 = vpack.c.b16 %v146, %v144
  %v193 = vpack.c.b16 %v149, %v147
  %v194 = vpack.c.b16 %v150, %v148
  %v195 = vpack.c.b16 %v153, %v151
  %v196 = vpack.c.b16 %v154, %v152
  %v197 = vpack.c.b16 %v157, %v155
  %v198 = vpack.c.b16 %v158, %v156
  %v199 = vpack.c.b16 %v161, %v159
  %v200 = vpack.c.b16 %v162, %v160
  %v201 = vpack.c.b16 %v165, %v163
  %v202 = vpack.c.b16 %v166, %v164
  %v203 = vpack.c.b16 %v169, %v167
  %v204 = vpack.c.b16 %v170, %v168
  %v205 = vpack.c.b16 %v173, %v171
  %v206 = vpack.c.b16 %v174, %v172
  %239 = vmatprep.subr.bf16.mxu0 %v176
  %240 = vmatpush1.bf16.msra.mxu0 %v175
  %241 = vmatprep.subr.bf16.mxu0 %v178
  %242 = vmatpush1.bf16.msra.mxu0 %v177
  %243 = vmatprep.subr.bf16.mxu0 %v180
  %244 = vmatpush1.bf16.msra.mxu0 %v179
  %245 = vmatprep.subr.bf16.mxu0 %v182
  %246 = vmatpush1.bf16.msra.mxu0 %v181
  %247 = vmatprep.subr.bf16.mxu0 %v184
  %248 = vmatpush1.bf16.msra.mxu0 %v183
  %249 = vmatprep.subr.bf16.mxu0 %v186
  %250 = vmatpush1.bf16.msra.mxu0 %v185
  %251 = vmatprep.subr.bf16.mxu0 %v188
  %252 = vmatpush1.bf16.msra.mxu0 %v187
  %253 = vmatprep.subr.bf16.mxu0 %v190
  %254 = vmatpush1.bf16.msra.mxu0 %v189
  %255 = vmatprep.subr.bf16.mxu0 %v192
  %256 = vmatpush1.bf16.msra.mxu0 %v191
  %257 = vmatprep.subr.bf16.mxu0 %v194
  %258 = vmatpush1.bf16.msra.mxu0 %v193
  %259 = vmatprep.subr.bf16.mxu0 %v196
  %260 = vmatpush1.bf16.msra.mxu0 %v195
  %261 = vmatprep.subr.bf16.mxu0 %v198
  %262 = vmatpush1.bf16.msra.mxu0 %v197
  %263 = vmatprep.subr.bf16.mxu0 %v200
  %264 = vmatpush1.bf16.msra.mxu0 %v199
  %265 = vmatprep.subr.bf16.mxu0 %v202
  %266 = vmatpush1.bf16.msra.mxu0 %v201
  %267 = vmatprep.subr.bf16.mxu0 %v204
  %268 = vmatpush1.bf16.msra.mxu0 %v203
  %269 = vmatprep.subr.bf16.mxu0 %v206
  %270 = vmatpush1.bf16.msra.mxu0 %v205
  %271 = vmatprep.mubr.bf16.mxu0 %v76
  %272 = vmatmul.mubr.bf16.gmra.mrb[0].mxu0 %v75
  %v273 = vpop.f32.mrb[0].mxu0
  %v274 = vadd.f32 %v62, %v273
  %v275 = vpop.f32.mrb[0].mxu0
  %v276 = vadd.f32 %v66, %v275
  %v277 = vpop.f32.mrb[0].mxu0
  %v278 = vadd.f32 %v62, %v277
  %v279 = vpop.f32.mrb[0].mxu0
  %v280 = vadd.f32 %v66, %v279
  %281 = vdwg.mxu0
  %v282 = vmax.f32 %v274, 0.0
  %v283 = vmax.f32 %v276, 0.0
  %v284 = vmax.f32 %v278, 0.0
  %v285 = vmax.f32 %v280, 0.0
  %286 = vst [vmem:[%s6] sm:$0xff] %v282
  %287 = vst [vmem:[%s6 + $0x8] sm:$0xff] %v283
  %288 = vst [vmem:[%s6 + $0x10] sm:$0xff] %v284
  %289 = vst [vmem:[%s6 + $0x18] sm:$0xff] %v285
  %v290 = vpack.c.bf16 %v284, %v282
  %v291 = vpack.c.bf16 %v285, %v283
  %v292 = vld [vmem:[%s3] sm:$0xff]
  %v293 = vld [vmem:[%s3 + $0x8] sm:$0xff]
  %v294 = vld [vmem:[%s3 + $0x10] sm:$0xff]
  %v295 = vld [vmem:[%s3 + $0x18] sm:$0xf]
  %v296 = vld [vmem:[%s3 + $0x1c] sm:$0xff]
  %v297 = vld [vmem:[%s3 + $0x24] sm:$0xff]
  %v298 = vld [vmem:[%s3 + $0x2c] sm:$0xff]
  %v299 = vld [vmem:[%s3 + $0x34] sm:$0xf]
  %v300 = vld [vmem:[%s3 + $0x38] sm:$0xff]
  %v301 = vld [vmem:[%s3 + $0x40] sm:$0xff]
  %v302 = vld [vmem:[%s3 + $0x48] sm:$0xff]
  %v303 = vld [vmem:[%s3 + $0x50] sm:$0xf]
  %v304 = vld [vmem:[%s3 + $0x54] sm:$0xff]
  %v305 = vld [vmem:[%s3 + $0x5c] sm:$0xff]
  %v306 = vld [vmem:[%s3 + $0x64] sm:$0xff]
  %v307 = vld [vmem:[%s3 + $0x6c] sm:$0xf]
  %v308 = vld [vmem:[%s3 + $0x70] sm:$0xff]
  %v309 = vld [vmem:[%s3 + $0x78] sm:$0xff]
  %v310 = vld [vmem:[%s3 + $0x80] sm:$0xff]
  %v311 = vld [vmem:[%s3 + $0x88] sm:$0xf]
  %v312 = vld [vmem:[%s3 + $0x8c] sm:$0xff]
  %v313 = vld [vmem:[%s3 + $0x94] sm:$0xff]
  %v314 = vld [vmem:[%s3 + $0x9c] sm:$0xff]
  %v315 = vld [vmem:[%s3 + $0xa4] sm:$0xf]
  %v316 = vld [vmem:[%s3 + $0xa8] sm:$0xff]
  %v317 = vld [vmem:[%s3 + $0xb0] sm:$0xff]
  %v318 = vld [vmem:[%s3 + $0xb8] sm:$0xff]
  %v319 = vld [vmem:[%s3 + $0xc0] sm:$0xf]
  %v320 = vld [vmem:[%s3 + $0xc4] sm:$0xff]
  %v321 = vld [vmem:[%s3 + $0xcc] sm:$0xff]
  %v322 = vld [vmem:[%s3 + $0xd4] sm:$0xff]
  %v323 = vld [vmem:[%s3 + $0xdc] sm:$0xf]
  %v324 = vld [vmem:[%s3 + $0xe0] sm:$0xff]
  %v325 = vld [vmem:[%s3 + $0xe8] sm:$0xff]
  %v326 = vld [vmem:[%s3 + $0xf0] sm:$0xff]
  %v327 = vld [vmem:[%s3 + $0xf8] sm:$0xf]
  %v328 = vld [vmem:[%s3 + $0xfc] sm:$0xff]
  %v329 = vld [vmem:[%s3 + $0x104] sm:$0xff]
  %v330 = vld [vmem:[%s3 + $0x10c] sm:$0xff]
  %v331 = vld [vmem:[%s3 + $0x114] sm:$0xf]
  %v332 = vld [vmem:[%s3 + $0x118] sm:$0xff]
  %v333 = vld [vmem:[%s3 + $0x120] sm:$0xff]
  %v334 = vld [vmem:[%s3 + $0x128] sm:$0xff]
  %v335 = vld [vmem:[%s3 + $0x130] sm:$0xf]
  %v336 = vld [vmem:[%s3 + $0x134] sm:$0xff]
  %v337 = vld [vmem:[%s3 + $0x13c] sm:$0xff]
  %v338 = vld [vmem:[%s3 + $0x144] sm:$0xff]
  %v339 = vld [vmem:[%s3 + $0x14c] sm:$0xf]
  %v340 = vld [vmem:[%s3 + $0x150] sm:$0xff]
  %v341 = vld [vmem:[%s3 + $0x158] sm:$0xff]
  %v342 = vld [vmem:[%s3 + $0x160] sm:$0xff]
  %v343 = vld [vmem:[%s3 + $0x168] sm:$0xf]
  %v344 = vld [vmem:[%s3 + $0x16c] sm:$0xff]
  %v345 = vld [vmem:[%s3 + $0x174] sm:$0xff]
  %v346 = vld [vmem:[%s3 + $0x17c] sm:$0xff]
  %v347 = vld [vmem:[%s3 + $0x184] sm:$0xf]
  %v348 = vld [vmem:[%s3 + $0x188] sm:$0xff]
  %v349 = vld [vmem:[%s3 + $0x190] sm:$0xff]
  %v350 = vld [vmem:[%s3 + $0x198] sm:$0xff]
  %v351 = vld [vmem:[%s3 + $0x1a0] sm:$0xf]
  %v352 = vld [vmem:[%s3 + $0x1a4] sm:$0xff]
  %v353 = vld [vmem:[%s3 + $0x1ac] sm:$0xff]
  %v354 = vld [vmem:[%s3 + $0x1b4] sm:$0xff]
  %v355 = vld [vmem:[%s3 + $0x1bc] sm:$0xf]
  %v356 = vld [vmem:[%s3 + $0x1c0] sm:$0xff]
  %v357 = vld [vmem:[%s3 + $0x1c8] sm:$0xff]
  %v358 = vld [vmem:[%s3 + $0x1d0] sm:$0xff]
  %v359 = vld [vmem:[%s3 + $0x1d8] sm:$0xf]
  %v360 = vld [vmem:[%s3 + $0x1dc] sm:$0xff]
  %v361 = vld [vmem:[%s3 + $0x1e4] sm:$0xff]
  %v362 = vld [vmem:[%s3 + $0x1ec] sm:$0xff]
  %v363 = vld [vmem:[%s3 + $0x1f4] sm:$0xf]
  %v364 = vld [vmem:[%s3 + $0x1f8] sm:$0xff]
  %v365 = vld [vmem:[%s3 + $0x200] sm:$0xff]
  %v366 = vld [vmem:[%s3 + $0x208] sm:$0xff]
  %v367 = vld [vmem:[%s3 + $0x210] sm:$0xf]
  %v368 = vld [vmem:[%s3 + $0x214] sm:$0xff]
  %v369 = vld [vmem:[%s3 + $0x21c] sm:$0xff]
  %v370 = vld [vmem:[%s3 + $0x224] sm:$0xff]
  %v371 = vld [vmem:[%s3 + $0x22c] sm:$0xf]
  %v372 = vld [vmem:[%s3 + $0x230] sm:$0xff]
  %v373 = vld [vmem:[%s3 + $0x238] sm:$0xff]
  %v374 = vld [vmem:[%s3 + $0x240] sm:$0xff]
  %v375 = vld [vmem:[%s3 + $0x248] sm:$0xf]
  %v376 = vld [vmem:[%s3 + $0x24c] sm:$0xff]
  %v377 = vld [vmem:[%s3 + $0x254] sm:$0xff]
  %v378 = vld [vmem:[%s3 + $0x25c] sm:$0xff]
  %v379 = vld [vmem:[%s3 + $0x264] sm:$0xf]
  %v380 = vld [vmem:[%s3 + $0x268] sm:$0xff]
  %v381 = vld [vmem:[%s3 + $0x270] sm:$0xff]
  %v382 = vld [vmem:[%s3 + $0x278] sm:$0xff]
  %v383 = vld [vmem:[%s3 + $0x280] sm:$0xf]
  %v384 = vld [vmem:[%s3 + $0x284] sm:$0xff]
  %v385 = vld [vmem:[%s3 + $0x28c] sm:$0xff]
  %v386 = vld [vmem:[%s3 + $0x294] sm:$0xff]
  %v387 = vld [vmem:[%s3 + $0x29c] sm:$0xf]
  %v388 = vld [vmem:[%s3 + $0x2a0] sm:$0xff]
  %v389 = vld [vmem:[%s3 + $0x2a8] sm:$0xff]
  %v390 = vld [vmem:[%s3 + $0x2b0] sm:$0xff]
  %v391 = vld [vmem:[%s3 + $0x2b8] sm:$0xf]
  %v392 = vld [vmem:[%s3 + $0x2bc] sm:$0xff]
  %v393 = vld [vmem:[%s3 + $0x2c4] sm:$0xff]
  %v394 = vld [vmem:[%s3 + $0x2cc] sm:$0xff]
  %v395 = vld [vmem:[%s3 + $0x2d4] sm:$0xf]
  %v396 = vld [vmem:[%s3 + $0x2d8] sm:$0xff]
  %v397 = vld [vmem:[%s3 + $0x2e0] sm:$0xff]
  %v398 = vld [vmem:[%s3 + $0x2e8] sm:$0xff]
  %v399 = vld [vmem:[%s3 + $0x2f0] sm:$0xf]
  %v400 = vld [vmem:[%s3 + $0x2f4] sm:$0xff]
  %v401 = vld [vmem:[%s3 + $0x2fc] sm:$0xff]
  %v402 = vld [vmem:[%s3 + $0x304] sm:$0xff]
  %v403 = vld [vmem:[%s3 + $0x30c] sm:$0xf]
  %v404 = vld [vmem:[%s3 + $0x310] sm:$0xff]
  %v405 = vld [vmem:[%s3 + $0x318] sm:$0xff]
  %v406 = vld [vmem:[%s3 + $0x320] sm:$0xff]
  %v407 = vld [vmem:[%s3 + $0x328] sm:$0xf]
  %v408 = vld [vmem:[%s3 + $0x32c] sm:$0xff]
  %v409 = vld [vmem:[%s3 + $0x334] sm:$0xff]
  %v410 = vld [vmem:[%s3 + $0x33c] sm:$0xff]
  %v411 = vld [vmem:[%s3 + $0x344] sm:$0xf]
  %v412 = vld [vmem:[%s3 + $0x348] sm:$0xff]
  %v413 = vld [vmem:[%s3 + $0x350] sm:$0xff]
  %v414 = vld [vmem:[%s3 + $0x358] sm:$0xff]
  %v415 = vld [vmem:[%s3 + $0x360] sm:$0xf]
  %v416 = vld [vmem:[%s3 + $0x364] sm:$0xff]
  %v417 = vld [vmem:[%s3 + $0x36c] sm:$0xff]
  %v418 = vld [vmem:[%s3 + $0x374] sm:$0xff]
  %v419 = vld [vmem:[%s3 + $0x37c] sm:$0xf]
  %v420 = vld [vmem:[%s4] sm:$0xff]
  %v422 = vlaneseq
  %v423 = vshrl.u32 %v422, 7
  %v424 = vsub.s32 0, %v423
  %v425 = vrot.slane %v420, %v424
  %v426 = vlaneseq
  %v427 = vshrl.u32 %v426, 7
  %v428 = vsub.s32 1, %v427
  %v429 = vrot.slane %v420, %v428
  %v430 = vlaneseq
  %v431 = vshrl.u32 %v430, 7
  %v432 = vsub.s32 2, %v431
  %v433 = vrot.slane %v420, %v432
  %v434 = vlaneseq
  %v435 = vshrl.u32 %v434, 7
  %v436 = vsub.s32 3, %v435
  %v437 = vrot.slane %v420, %v436
  %v438 = vlaneseq
  %v439 = vshrl.u32 %v438, 7
  %v440 = vsub.s32 4, %v439
  %v441 = vrot.slane %v420, %v440
  %v442 = vlaneseq
  %v443 = vshrl.u32 %v442, 7
  %v444 = vsub.s32 5, %v443
  %v445 = vrot.slane %v420, %v444
  %v446 = vlaneseq
  %v447 = vshrl.u32 %v446, 7
  %v448 = vsub.s32 6, %v447
  %v449 = vrot.slane %v420, %v448
  %v585 = vunpack.c.l.b16 %v292
  %v586 = vunpack.c.h.b16 %v292
  %v587 = vunpack.c.l.b16 %v293
  %v588 = vunpack.c.h.b16 %v293
  %v589 = vunpack.c.l.b16 %v294
  %v590 = vunpack.c.h.b16 %v294
  %v591 = vunpack.c.l.b16 %v295
  %v592 = vunpack.c.l.b16 %v296
  %v593 = vunpack.c.h.b16 %v296
  %v594 = vunpack.c.l.b16 %v297
  %v595 = vunpack.c.h.b16 %v297
  %v596 = vunpack.c.l.b16 %v298
  %v597 = vunpack.c.h.b16 %v298
  %v598 = vunpack.c.l.b16 %v299
  %v599 = vunpack.c.l.b16 %v300
  %v600 = vunpack.c.h.b16 %v300
  %v601 = vunpack.c.l.b16 %v301
  %v602 = vunpack.c.h.b16 %v301
  %v603 = vunpack.c.l.b16 %v302
  %v604 = vunpack.c.h.b16 %v302
  %v605 = vunpack.c.l.b16 %v303
  %v606 = vunpack.c.l.b16 %v304
  %v607 = vunpack.c.h.b16 %v304
  %v608 = vunpack.c.l.b16 %v305
  %v609 = vunpack.c.h.b16 %v305
  %v610 = vunpack.c.l.b16 %v306
  %v611 = vunpack.c.h.b16 %v306
  %v612 = vunpack.c.l.b16 %v307
  %v613 = vunpack.c.l.b16 %v308
  %v614 = vunpack.c.h.b16 %v308
  %v615 = vunpack.c.l.b16 %v309
  %v616 = vunpack.c.h.b16 %v309
  %v617 = vunpack.c.l.b16 %v310
  %v618 = vunpack.c.h.b16 %v310
  %v619 = vunpack.c.l.b16 %v311
  %v620 = vunpack.c.l.b16 %v312
  %v621 = vunpack.c.h.b16 %v312
  %v622 = vunpack.c.l.b16 %v313
  %v623 = vunpack.c.h.b16 %v313
  %v624 = vunpack.c.l.b16 %v314
  %v625 = vunpack.c.h.b16 %v314
  %v626 = vunpack.c.l.b16 %v315
  %v627 = vunpack.c.l.b16 %v316
  %v628 = vunpack.c.h.b16 %v316
  %v629 = vunpack.c.l.b16 %v317
  %v630 = vunpack.c.h.b16 %v317
  %v631 = vunpack.c.l.b16 %v318
  %v632 = vunpack.c.h.b16 %v318
  %v633 = vunpack.c.l.b16 %v319
  %v634 = vunpack.c.l.b16 %v320
  %v635 = vunpack.c.h.b16 %v320
  %v636 = vunpack.c.l.b16 %v321
  %v637 = vunpack.c.h.b16 %v321
  %v638 = vunpack.c.l.b16 %v322
  %v639 = vunpack.c.h.b16 %v322
  %v640 = vunpack.c.l.b16 %v323
  %v641 = vunpack.c.l.b16 %v324
  %v642 = vunpack.c.h.b16 %v324
  %v643 = vunpack.c.l.b16 %v325
  %v644 = vunpack.c.h.b16 %v325
  %v645 = vunpack.c.l.b16 %v326
  %v646 = vunpack.c.h.b16 %v326
  %v647 = vunpack.c.l.b16 %v327
  %v648 = vunpack.c.l.b16 %v328
  %v649 = vunpack.c.h.b16 %v328
  %v650 = vunpack.c.l.b16 %v329
  %v651 = vunpack.c.h.b16 %v329
  %v652 = vunpack.c.l.b16 %v330
  %v653 = vunpack.c.h.b16 %v330
  %v654 = vunpack.c.l.b16 %v331
  %v655 = vunpack.c.l.b16 %v332
  %v656 = vunpack.c.h.b16 %v332
  %v657 = vunpack.c.l.b16 %v333
  %v658 = vunpack.c.h.b16 %v333
  %v659 = vunpack.c.l.b16 %v334
  %v660 = vunpack.c.h.b16 %v334
  %v661 = vunpack.c.l.b16 %v335
  %v662 = vunpack.c.l.b16 %v336
  %v663 = vunpack.c.h.b16 %v336
  %v664 = vunpack.c.l.b16 %v337
  %v665 = vunpack.c.h.b16 %v337
  %v666 = vunpack.c.l.b16 %v338
  %v667 = vunpack.c.h.b16 %v338
  %v668 = vunpack.c.l.b16 %v339
  %v669 = vunpack.c.l.b16 %v340
  %v670 = vunpack.c.h.b16 %v340
  %v671 = vunpack.c.l.b16 %v341
  %v672 = vunpack.c.h.b16 %v341
  %v673 = vunpack.c.l.b16 %v342
  %v674 = vunpack.c.h.b16 %v342
  %v675 = vunpack.c.l.b16 %v343
  %v676 = vunpack.c.l.b16 %v344
  %v677 = vunpack.c.h.b16 %v344
  %v678 = vunpack.c.l.b16 %v345
  %v679 = vunpack.c.h.b16 %v345
  %v680 = vunpack.c.l.b16 %v346
  %v681 = vunpack.c.h.b16 %v346
  %v682 = vunpack.c.l.b16 %v347
  %v683 = vunpack.c.l.b16 %v348
  %v684 = vunpack.c.h.b16 %v348
  %v685 = vunpack.c.l.b16 %v349
  %v686 = vunpack.c.h.b16 %v349
  %v687 = vunpack.c.l.b16 %v350
  %v688 = vunpack.c.h.b16 %v350
  %v689 = vunpack.c.l.b16 %v351
  %v690 = vunpack.c.l.b16 %v352
  %v691 = vunpack.c.h.b16 %v352
  %v692 = vunpack.c.l.b16 %v353
  %v693 = vunpack.c.h.b16 %v353
  %v694 = vunpack.c.l.b16 %v354
  %v695 = vunpack.c.h.b16 %v354
  %v696 = vunpack.c.l.b16 %v355
  %v697 = vunpack.c.l.b16 %v356
  %v698 = vunpack.c.h.b16 %v356
  %v699 = vunpack.c.l.b16 %v357
  %v700 = vunpack.c.h.b16 %v357
  %v701 = vunpack.c.l.b16 %v358
  %v702 = vunpack.c.h.b16 %v358
  %v703 = vunpack.c.l.b16 %v359
  %v704 = vunpack.c.l.b16 %v360
  %v705 = vunpack.c.h.b16 %v360
  %v706 = vunpack.c.l.b16 %v361
  %v707 = vunpack.c.h.b16 %v361
  %v708 = vunpack.c.l.b16 %v362
  %v709 = vunpack.c.h.b16 %v362
  %v710 = vunpack.c.l.b16 %v363
  %v711 = vunpack.c.l.b16 %v364
  %v712 = vunpack.c.h.b16 %v364
  %v713 = vunpack.c.l.b16 %v365
  %v714 = vunpack.c.h.b16 %v365
  %v715 = vunpack.c.l.b16 %v366
  %v716 = vunpack.c.h.b16 %v366
  %v717 = vunpack.c.l.b16 %v367
  %v718 = vunpack.c.l.b16 %v368
  %v719 = vunpack.c.h.b16 %v368
  %v720 = vunpack.c.l.b16 %v369
  %v721 = vunpack.c.h.b16 %v369
  %v722 = vunpack.c.l.b16 %v370
  %v723 = vunpack.c.h.b16 %v370
  %v724 = vunpack.c.l.b16 %v371
  %v725 = vunpack.c.l.b16 %v372
  %v726 = vunpack.c.h.b16 %v372
  %v727 = vunpack.c.l.b16 %v373
  %v728 = vunpack.c.h.b16 %v373
  %v729 = vunpack.c.l.b16 %v374
  %v730 = vunpack.c.h.b16 %v374
  %v731 = vunpack.c.l.b16 %v375
  %v732 = vunpack.c.l.b16 %v376
  %v733 = vunpack.c.h.b16 %v376
  %v734 = vunpack.c.l.b16 %v377
  %v735 = vunpack.c.h.b16 %v377
  %v736 = vunpack.c.l.b16 %v378
  %v737 = vunpack.c.h.b16 %v378
  %v738 = vunpack.c.l.b16 %v379
  %v739 = vunpack.c.l.b16 %v380
  %v740 = vunpack.c.h.b16 %v380
  %v741 = vunpack.c.l.b16 %v381
  %v742 = vunpack.c.h.b16 %v381
  %v743 = vunpack.c.l.b16 %v382
  %v744 = vunpack.c.h.b16 %v382
  %v745 = vunpack.c.l.b16 %v383
  %v746 = vunpack.c.l.b16 %v384
  %v747 = vunpack.c.h.b16 %v384
  %v748 = vunpack.c.l.b16 %v385
  %v749 = vunpack.c.h.b16 %v385
  %v750 = vunpack.c.l.b16 %v386
  %v751 = vunpack.c.h.b16 %v386
  %v752 = vunpack.c.l.b16 %v387
  %v753 = vunpack.c.l.b16 %v388
  %v754 = vunpack.c.h.b16 %v388
  %v755 = vunpack.c.l.b16 %v389
  %v756 = vunpack.c.h.b16 %v389
  %v757 = vunpack.c.l.b16 %v390
  %v758 = vunpack.c.h.b16 %v390
  %v759 = vunpack.c.l.b16 %v391
  %v760 = vunpack.c.l.b16 %v392
  %v761 = vunpack.c.h.b16 %v392
  %v762 = vunpack.c.l.b16 %v393
  %v763 = vunpack.c.h.b16 %v393
  %v764 = vunpack.c.l.b16 %v394
  %v765 = vunpack.c.h.b16 %v394
  %v766 = vunpack.c.l.b16 %v395
  %v767 = vunpack.c.l.b16 %v396
  %v768 = vunpack.c.h.b16 %v396
  %v769 = vunpack.c.l.b16 %v397
  %v770 = vunpack.c.h.b16 %v397
  %v771 = vunpack.c.l.b16 %v398
  %v772 = vunpack.c.h.b16 %v398
  %v773 = vunpack.c.l.b16 %v399
  %v774 = vunpack.c.l.b16 %v400
  %v775 = vunpack.c.h.b16 %v400
  %v776 = vunpack.c.l.b16 %v401
  %v777 = vunpack.c.h.b16 %v401
  %v778 = vunpack.c.l.b16 %v402
  %v779 = vunpack.c.h.b16 %v402
  %v780 = vunpack.c.l.b16 %v403
  %v781 = vunpack.c.l.b16 %v404
  %v782 = vunpack.c.h.b16 %v404
  %v783 = vunpack.c.l.b16 %v405
  %v784 = vunpack.c.h.b16 %v405
  %v785 = vunpack.c.l.b16 %v406
  %v786 = vunpack.c.h.b16 %v406
  %v787 = vunpack.c.l.b16 %v407
  %v788 = vunpack.c.l.b16 %v408
  %v789 = vunpack.c.h.b16 %v408
  %v790 = vunpack.c.l.b16 %v409
  %v791 = vunpack.c.h.b16 %v409
  %v792 = vunpack.c.l.b16 %v410
  %v793 = vunpack.c.h.b16 %v410
  %v794 = vunpack.c.l.b16 %v411
  %v795 = vunpack.c.l.b16 %v412
  %v796 = vunpack.c.h.b16 %v412
  %v797 = vunpack.c.l.b16 %v413
  %v798 = vunpack.c.h.b16 %v413
  %v799 = vunpack.c.l.b16 %v414
  %v800 = vunpack.c.h.b16 %v414
  %v801 = vunpack.c.l.b16 %v415
  %v802 = vunpack.c.l.b16 %v416
  %v803 = vunpack.c.h.b16 %v416
  %v804 = vunpack.c.l.b16 %v417
  %v805 = vunpack.c.h.b16 %v417
  %v806 = vunpack.c.l.b16 %v418
  %v807 = vunpack.c.h.b16 %v418
  %v808 = vunpack.c.l.b16 %v419
  %v809 = vpack.c.b16 %v592, %v585
  %v810 = vpack.c.b16 %v593, %v586
  %v811 = vpack.c.b16 %v594, %v587
  %v812 = vpack.c.b16 %v595, %v588
  %v813 = vpack.c.b16 %v596, %v589
  %v814 = vpack.c.b16 %v597, %v590
  %v815 = vpack.c.b16 %v598, %v591
  %v816 = vpack.c.b16 %v606, %v599
  %v817 = vpack.c.b16 %v607, %v600
  %v818 = vpack.c.b16 %v608, %v601
  %v819 = vpack.c.b16 %v609, %v602
  %v820 = vpack.c.b16 %v610, %v603
  %v821 = vpack.c.b16 %v611, %v604
  %v822 = vpack.c.b16 %v612, %v605
  %v823 = vpack.c.b16 %v620, %v613
  %v824 = vpack.c.b16 %v621, %v614
  %v825 = vpack.c.b16 %v622, %v615
  %v826 = vpack.c.b16 %v623, %v616
  %v827 = vpack.c.b16 %v624, %v617
  %v828 = vpack.c.b16 %v625, %v618
  %v829 = vpack.c.b16 %v626, %v619
  %v830 = vpack.c.b16 %v634, %v627
  %v831 = vpack.c.b16 %v635, %v628
  %v832 = vpack.c.b16 %v636, %v629
  %v833 = vpack.c.b16 %v637, %v630
  %v834 = vpack.c.b16 %v638, %v631
  %v835 = vpack.c.b16 %v639, %v632
  %v836 = vpack.c.b16 %v640, %v633
  %v837 = vpack.c.b16 %v648, %v641
  %v838 = vpack.c.b16 %v649, %v642
  %v839 = vpack.c.b16 %v650, %v643
  %v840 = vpack.c.b16 %v651, %v644
  %v841 = vpack.c.b16 %v652, %v645
  %v842 = vpack.c.b16 %v653, %v646
  %v843 = vpack.c.b16 %v654, %v647
  %v844 = vpack.c.b16 %v662, %v655
  %v845 = vpack.c.b16 %v663, %v656
  %v846 = vpack.c.b16 %v664, %v657
  %v847 = vpack.c.b16 %v665, %v658
  %v848 = vpack.c.b16 %v666, %v659
  %v849 = vpack.c.b16 %v667, %v660
  %v850 = vpack.c.b16 %v668, %v661
  %v851 = vpack.c.b16 %v676, %v669
  %v852 = vpack.c.b16 %v677, %v670
  %v853 = vpack.c.b16 %v678, %v671
  %v854 = vpack.c.b16 %v679, %v672
  %v855 = vpack.c.b16 %v680, %v673
  %v856 = vpack.c.b16 %v681, %v674
  %v857 = vpack.c.b16 %v682, %v675
  %v858 = vpack.c.b16 %v690, %v683
  %v859 = vpack.c.b16 %v691, %v684
  %v860 = vpack.c.b16 %v692, %v685
  %v861 = vpack.c.b16 %v693, %v686
  %v862 = vpack.c.b16 %v694, %v687
  %v863 = vpack.c.b16 %v695, %v688
  %v864 = vpack.c.b16 %v696, %v689
  %v865 = vpack.c.b16 %v704, %v697
  %v866 = vpack.c.b16 %v705, %v698
  %v867 = vpack.c.b16 %v706, %v699
  %v868 = vpack.c.b16 %v707, %v700
  %v869 = vpack.c.b16 %v708, %v701
  %v870 = vpack.c.b16 %v709, %v702
  %v871 = vpack.c.b16 %v710, %v703
  %v872 = vpack.c.b16 %v718, %v711
  %v873 = vpack.c.b16 %v719, %v712
  %v874 = vpack.c.b16 %v720, %v713
  %v875 = vpack.c.b16 %v721, %v714
  %v876 = vpack.c.b16 %v722, %v715
  %v877 = vpack.c.b16 %v723, %v716
  %v878 = vpack.c.b16 %v724, %v717
  %v879 = vpack.c.b16 %v732, %v725
  %v880 = vpack.c.b16 %v733, %v726
  %v881 = vpack.c.b16 %v734, %v727
  %v882 = vpack.c.b16 %v735, %v728
  %v883 = vpack.c.b16 %v736, %v729
  %v884 = vpack.c.b16 %v737, %v730
  %v885 = vpack.c.b16 %v738, %v731
  %v886 = vpack.c.b16 %v746, %v739
  %v887 = vpack.c.b16 %v747, %v740
  %v888 = vpack.c.b16 %v748, %v741
  %v889 = vpack.c.b16 %v749, %v742
  %v890 = vpack.c.b16 %v750, %v743
  %v891 = vpack.c.b16 %v751, %v744
  %v892 = vpack.c.b16 %v752, %v745
  %v893 = vpack.c.b16 %v760, %v753
  %v894 = vpack.c.b16 %v761, %v754
  %v895 = vpack.c.b16 %v762, %v755
  %v896 = vpack.c.b16 %v763, %v756
  %v897 = vpack.c.b16 %v764, %v757
  %v898 = vpack.c.b16 %v765, %v758
  %v899 = vpack.c.b16 %v766, %v759
  %v900 = vpack.c.b16 %v774, %v767
  %v901 = vpack.c.b16 %v775, %v768
  %v902 = vpack.c.b16 %v776, %v769
  %v903 = vpack.c.b16 %v777, %v770
  %v904 = vpack.c.b16 %v778, %v771
  %v905 = vpack.c.b16 %v779, %v772
  %v906 = vpack.c.b16 %v780, %v773
  %v907 = vpack.c.b16 %v788, %v781
  %v908 = vpack.c.b16 %v789, %v782
  %v909 = vpack.c.b16 %v790, %v783
  %v910 = vpack.c.b16 %v791, %v784
  %v911 = vpack.c.b16 %v792, %v785
  %v912 = vpack.c.b16 %v793, %v786
  %v913 = vpack.c.b16 %v794, %v787
  %v914 = vpack.c.b16 %v802, %v795
  %v915 = vpack.c.b16 %v803, %v796
  %v916 = vpack.c.b16 %v804, %v797
  %v917 = vpack.c.b16 %v805, %v798
  %v918 = vpack.c.b16 %v806, %v799
  %v919 = vpack.c.b16 %v807, %v800
  %v920 = vpack.c.b16 %v808, %v801
  %1033 = vmatprep.subr.bf16.mxu0 %v810
  %1034 = vmatpush1.bf16.msra.mxu0 %v809
  %1035 = vmatprep.subr.bf16.mxu0 %v817
  %1036 = vmatpush1.bf16.msra.mxu0 %v816
  %1037 = vmatprep.subr.bf16.mxu0 %v824
  %1038 = vmatpush1.bf16.msra.mxu0 %v823
  %1039 = vmatprep.subr.bf16.mxu0 %v831
  %1040 = vmatpush1.bf16.msra.mxu0 %v830
  %1041 = vmatprep.subr.bf16.mxu0 %v838
  %1042 = vmatpush1.bf16.msra.mxu0 %v837
  %1043 = vmatprep.subr.bf16.mxu0 %v845
  %1044 = vmatpush1.bf16.msra.mxu0 %v844
  %1045 = vmatprep.subr.bf16.mxu0 %v852
  %1046 = vmatpush1.bf16.msra.mxu0 %v851
  %1047 = vmatprep.subr.bf16.mxu0 %v859
  %1048 = vmatpush1.bf16.msra.mxu0 %v858
  %1049 = vmatprep.subr.bf16.mxu0 %v866
  %1050 = vmatpush1.bf16.msra.mxu0 %v865
  %1051 = vmatprep.subr.bf16.mxu0 %v873
  %1052 = vmatpush1.bf16.msra.mxu0 %v872
  %1053 = vmatprep.subr.bf16.mxu0 %v880
  %1054 = vmatpush1.bf16.msra.mxu0 %v879
  %1055 = vmatprep.subr.bf16.mxu0 %v887
  %1056 = vmatpush1.bf16.msra.mxu0 %v886
  %1057 = vmatprep.subr.bf16.mxu0 %v894
  %1058 = vmatpush1.bf16.msra.mxu0 %v893
  %1059 = vmatprep.subr.bf16.mxu0 %v901
  %1060 = vmatpush1.bf16.msra.mxu0 %v900
  %1061 = vmatprep.subr.bf16.mxu0 %v908
  %1062 = vmatpush1.bf16.msra.mxu0 %v907
  %1063 = vmatprep.subr.bf16.mxu0 %v915
  %1064 = vmatpush1.bf16.msra.mxu0 %v914
  %1065 = vmatprep.mubr.bf16.mxu0 %v291
  %1066 = vmatmul.mubr.bf16.gmra.mrb[0].mxu0 %v290
  %v1067 = vpop.f32.mrb[0].mxu0
  %v1068 = vadd.f32 %v425, %v1067
  %v1069 = vpop.f32.mrb[0].mxu0
  %v1070 = vadd.f32 %v429, %v1069
  %v1071 = vpop.f32.mrb[0].mxu0
  %v1072 = vadd.f32 %v425, %v1071
  %v1073 = vpop.f32.mrb[0].mxu0
  %v1074 = vadd.f32 %v429, %v1073
  %1075 = vdwg.mxu0
  %1076 = vmatprep.subr.bf16.mxu0 %v812
  %1077 = vmatpush1.bf16.msra.mxu0 %v811
  %1078 = vmatprep.subr.bf16.mxu0 %v819
  %1079 = vmatpush1.bf16.msra.mxu0 %v818
  %1080 = vmatprep.subr.bf16.mxu0 %v826
  %1081 = vmatpush1.bf16.msra.mxu0 %v825
  %1082 = vmatprep.subr.bf16.mxu0 %v833
  %1083 = vmatpush1.bf16.msra.mxu0 %v832
  %1084 = vmatprep.subr.bf16.mxu0 %v840
  %1085 = vmatpush1.bf16.msra.mxu0 %v839
  %1086 = vmatprep.subr.bf16.mxu0 %v847
  %1087 = vmatpush1.bf16.msra.mxu0 %v846
  %1088 = vmatprep.subr.bf16.mxu0 %v854
  %1089 = vmatpush1.bf16.msra.mxu0 %v853
  %1090 = vmatprep.subr.bf16.mxu0 %v861
  %1091 = vmatpush1.bf16.msra.mxu0 %v860
  %1092 = vmatprep.subr.bf16.mxu0 %v868
  %1093 = vmatpush1.bf16.msra.mxu0 %v867
  %1094 = vmatprep.subr.bf16.mxu0 %v875
  %1095 = vmatpush1.bf16.msra.mxu0 %v874
  %1096 = vmatprep.subr.bf16.mxu0 %v882
  %1097 = vmatpush1.bf16.msra.mxu0 %v881
  %1098 = vmatprep.subr.bf16.mxu0 %v889
  %1099 = vmatpush1.bf16.msra.mxu0 %v888
  %1100 = vmatprep.subr.bf16.mxu0 %v896
  %1101 = vmatpush1.bf16.msra.mxu0 %v895
  %1102 = vmatprep.subr.bf16.mxu0 %v903
  %1103 = vmatpush1.bf16.msra.mxu0 %v902
  %1104 = vmatprep.subr.bf16.mxu0 %v910
  %1105 = vmatpush1.bf16.msra.mxu0 %v909
  %1106 = vmatprep.subr.bf16.mxu0 %v917
  %1107 = vmatpush1.bf16.msra.mxu0 %v916
  %1108 = vmatprep.mubr.bf16.mxu0 %v291
  %1109 = vmatmul.mubr.bf16.gmra.mrb[0].mxu0 %v290
  %v1110 = vpop.f32.mrb[0].mxu0
  %v1111 = vadd.f32 %v433, %v1110
  %v1112 = vpop.f32.mrb[0].mxu0
  %v1113 = vadd.f32 %v437, %v1112
  %v1114 = vpop.f32.mrb[0].mxu0
  %v1115 = vadd.f32 %v433, %v1114
  %v1116 = vpop.f32.mrb[0].mxu0
  %v1117 = vadd.f32 %v437, %v1116
  %1118 = vdwg.mxu0
  %1119 = vmatprep.subr.bf16.mxu0 %v814
  %1120 = vmatpush1.bf16.msra.mxu0 %v813
  %1121 = vmatprep.subr.bf16.mxu0 %v821
  %1122 = vmatpush1.bf16.msra.mxu0 %v820
  %1123 = vmatprep.subr.bf16.mxu0 %v828
  %1124 = vmatpush1.bf16.msra.mxu0 %v827
  %1125 = vmatprep.subr.bf16.mxu0 %v835
  %1126 = vmatpush1.bf16.msra.mxu0 %v834
  %1127 = vmatprep.subr.bf16.mxu0 %v842
  %1128 = vmatpush1.bf16.msra.mxu0 %v841
  %1129 = vmatprep.subr.bf16.mxu0 %v849
  %1130 = vmatpush1.bf16.msra.mxu0 %v848
  %1131 = vmatprep.subr.bf16.mxu0 %v856
  %1132 = vmatpush1.bf16.msra.mxu0 %v855
  %1133 = vmatprep.subr.bf16.mxu0 %v863
  %1134 = vmatpush1.bf16.msra.mxu0 %v862
  %1135 = vmatprep.subr.bf16.mxu0 %v870
  %1136 = vmatpush1.bf16.msra.mxu0 %v869
  %1137 = vmatprep.subr.bf16.mxu0 %v877
  %1138 = vmatpush1.bf16.msra.mxu0 %v876
  %1139 = vmatprep.subr.bf16.mxu0 %v884
  %1140 = vmatpush1.bf16.msra.mxu0 %v883
  %1141 = vmatprep.subr.bf16.mxu0 %v891
  %1142 = vmatpush1.bf16.msra.mxu0 %v890
  %1143 = vmatprep.subr.bf16.mxu0 %v898
  %1144 = vmatpush1.bf16.msra.mxu0 %v897
  %1145 = vmatprep.subr.bf16.mxu0 %v905
  %1146 = vmatpush1.bf16.msra.mxu0 %v904
  %1147 = vmatprep.subr.bf16.mxu0 %v912
  %1148 = vmatpush1.bf16.msra.mxu0 %v911
  %1149 = vmatprep.subr.bf16.mxu0 %v919
  %1150 = vmatpush1.bf16.msra.mxu0 %v918
  %1151 = vmatprep.mubr.bf16.mxu0 %v291
  %1152 = vmatmul.mubr.bf16.gmra.mrb[0].mxu0 %v290
  %v1153 = vpop.f32.mrb[0].mxu0
  %v1154 = vadd.f32 %v441, %v1153
  %v1155 = vpop.f32.mrb[0].mxu0
  %v1156 = vadd.f32 %v445, %v1155
  %v1157 = vpop.f32.mrb[0].mxu0
  %v1158 = vadd.f32 %v441, %v1157
  %v1159 = vpop.f32.mrb[0].mxu0
  %v1160 = vadd.f32 %v445, %v1159
  %1161 = vdwg.mxu0
  %1162 = vmatprep.subr.bf16.mxu0 0
  %1163 = vmatpush1.bf16.msra.mxu0 %v815
  %1164 = vmatprep.subr.bf16.mxu0 0
  %1165 = vmatpush1.bf16.msra.mxu0 %v822
  %1166 = vmatprep.subr.bf16.mxu0 0
  %1167 = vmatpush1.bf16.msra.mxu0 %v829
  %1168 = vmatprep.subr.bf16.mxu0 0
  %1169 = vmatpush1.bf16.msra.mxu0 %v836
  %1170 = vmatprep.subr.bf16.mxu0 0
  %1171 = vmatpush1.bf16.msra.mxu0 %v843
  %1172 = vmatprep.subr.bf16.mxu0 0
  %1173 = vmatpush1.bf16.msra.mxu0 %v850
  %1174 = vmatprep.subr.bf16.mxu0 0
  %1175 = vmatpush1.bf16.msra.mxu0 %v857
  %1176 = vmatprep.subr.bf16.mxu0 0
  %1177 = vmatpush1.bf16.msra.mxu0 %v864
  %1178 = vmatprep.subr.bf16.mxu0 0
  %1179 = vmatpush1.bf16.msra.mxu0 %v871
  %1180 = vmatprep.subr.bf16.mxu0 0
  %1181 = vmatpush1.bf16.msra.mxu0 %v878
  %1182 = vmatprep.subr.bf16.mxu0 0
  %1183 = vmatpush1.bf16.msra.mxu0 %v885
  %1184 = vmatprep.subr.bf16.mxu0 0
  %1185 = vmatpush1.bf16.msra.mxu0 %v892
  %1186 = vmatprep.subr.bf16.mxu0 0
  %1187 = vmatpush1.bf16.msra.mxu0 %v899
  %1188 = vmatprep.subr.bf16.mxu0 0
  %1189 = vmatpush1.bf16.msra.mxu0 %v906
  %1190 = vmatprep.subr.bf16.mxu0 0
  %1191 = vmatpush1.bf16.msra.mxu0 %v913
  %1192 = vmatprep.subr.bf16.mxu0 0
  %1193 = vmatpush1.bf16.msra.mxu0 %v920
  %1194 = vmatprep.mubr.bf16.mxu0 %v291
  %1195 = vmatmul.mubr.bf16.gmra.mrb[0].mxu0 %v290
  %v1196 = vpop.f32.mrb[0].mxu0
  %v1197 = vadd.f32 %v449, %v1196
  %v1198 = vpop.f32.mrb[0].mxu0
  %v1199 = vpop.f32.mrb[0].mxu0
  %v1200 = vadd.f32 %v449, %v1199
  %v1201 = vpop.f32.mrb[0].mxu0
  %1202 = vdwg.mxu0
  %v1203 = vtanh.pop %v1068
  %v1204 = vtanh.pop %v1070
  %v1205 = vtanh.pop %v1111
  %v1206 = vtanh.pop %v1113
  %v1207 = vtanh.pop %v1154
  %v1208 = vtanh.pop %v1156
  %v1209 = vtanh.pop %v1197
  %v1210 = vtanh.pop %v1072
  %v1211 = vtanh.pop %v1074
  %v1212 = vtanh.pop %v1115
  %v1213 = vtanh.pop %v1117
  %v1214 = vtanh.pop %v1158
  %v1215 = vtanh.pop %v1160
  %v1216 = vtanh.pop %v1200
  %1217 = vst [vmem:[%s5] sm:$0xff] %v1203
  %1218 = vst [vmem:[%s5 + $0x8] sm:$0xff] %v1204
  %1219 = vst [vmem:[%s5 + $0x10] sm:$0xff] %v1205
  %1220 = vst [vmem:[%s5 + $0x18] sm:$0xff] %v1206
  %1221 = vst [vmem:[%s5 + $0x20] sm:$0xff] %v1207
  %1222 = vst [vmem:[%s5 + $0x28] sm:$0xff] %v1208
  %1223 = vst [vmem:[%s5 + $0x30] sm:$0xff] %v1209
  %1224 = vst [vmem:[%s5 + $0x38] sm:$0xff] %v1210
  %1225 = vst [vmem:[%s5 + $0x40] sm:$0xff] %v1211
  %1226 = vst [vmem:[%s5 + $0x48] sm:$0xff] %v1212
  %1227 = vst [vmem:[%s5 + $0x50] sm:$0xff] %v1213
  %1228 = vst [vmem:[%s5 + $0x58] sm:$0xff] %v1214
  %1229 = vst [vmem:[%s5 + $0x60] sm:$0xff] %v1215
  %1230 = vst [vmem:[%s5 + $0x68] sm:$0xff] %v1216
  // Predicated region
  $region22: #{domain_classifier_forward.1} parent=0 // pred_check
    _
  $region23: #{domain_classifier_forward.1} parent=0 // pred_check_branch
    %1232 = sbr.rel (0) target = $region25
  $region24: #{domain_classifier_forward.1} parent=0 // pred_region
    _
  $region25: #{domain_classifier_forward.1} parent=0 // pred_fallthru
    _
  // Predicated region
  $region26: #{domain_classifier_forward.1} parent=0 // pred_check
    _
  $region27: #{domain_classifier_forward.1} parent=0 // pred_check_branch
    %1234 = sbr.rel (0) target = $region29
  $region28: #{domain_classifier_forward.1} parent=0 // pred_region
    _
  $region29: #{domain_classifier_forward.1} parent=0 // pred_fallthru
    _
  // Predicated region
  $region30: #{domain_classifier_forward.1} parent=0 // pred_check
    _
  $region31: #{domain_classifier_forward.1} parent=0 // pred_check_branch
    %1236 = sbr.rel (0) target = $region33
  $region32: #{domain_classifier_forward.1} parent=0 // pred_region
    _
  $region33: #{domain_classifier_forward.1} parent=0 // pred_fallthru
    _
  // Predicated region
  $region34: #{domain_classifier_forward.1} parent=0 // pred_check
    _
  $region35: #{domain_classifier_forward.1} parent=0 // pred_check_branch
    %1238 = sbr.rel (0) target = $region37
  $region36: #{domain_classifier_forward.1} parent=0 // pred_region
    _
  $region37: #{domain_classifier_forward.1} parent=0 // pred_fallthru
    _

</llo_original>
